<compile_context>
chip_gen: v5e
topology: v5e:2x2
jax: 0.10.0
libtpu: 0.0.40
codegen_flags: <defaults>
</compile_context>

<pallas_src>
import functools

import jax
import jax.numpy as jnp
from jax.experimental import pallas as pl
from jax.experimental.pallas import tpu as pltpu

# ---------------------------------------------------------------------------
# Hyper-parameters (args.* in the original script; fixed small values here)
# ---------------------------------------------------------------------------
N_DIMENSION = 128          # args.n_dim        (128 -> lane-dense output)
SRC_INPUT_DIMENSION = 256  # args.src_input_dim
TAR_INPUT_DIMENSION = 512  # args.tar_input_dim
BN_EPS = 1e-5
TILE_M = 256               # pixels (rows) per grid step


# ---------------------------------------------------------------------------
# Pallas kernel: one M-tile of fused (1x1 conv) + (BatchNorm, eval mode)
# ---------------------------------------------------------------------------
def mapping_kernel(x_ref, w_ref, scale_ref, shift_ref, o_ref):
    """x_ref:(TILE_M, C_in)  w_ref:(C_in, N_DIM)  scale/shift:(1, N_DIM)."""
    y = jnp.dot(x_ref[...], w_ref[...], preferred_element_type=jnp.float32)
    o_ref[...] = y * scale_ref[...] + shift_ref[...]


def mapping_forward(x_nchw, params, *, tile_m=TILE_M):
    """Mapping.forward: 1x1 conv (no bias) + BatchNorm2d (eval running stats).

    x_nchw: (B, C_in, H, W) float32.  Returns (B, N_DIMENSION, H, W) float32.
    """
    B, C, H, W = x_nchw.shape
    out_dim = params["w"].shape[0]

    # NCHW -> pixel-major tokens (B*H*W, C_in): fold batch+spatial into M.
    tokens = jnp.transpose(x_nchw, (0, 2, 3, 1)).reshape(B * H * W, C)
    tokens = tokens.astype(jnp.float32)
    M = B * H * W
    m_tiles = pl.cdiv(M, tile_m)
    m_pad = m_tiles * tile_m
    if m_pad != M:
        tokens = jnp.pad(tokens, ((0, m_pad - M), (0, 0)))

    # Conv weight (out, in, 1, 1) -> matmul layout (in, out).
    w_mat = jnp.transpose(params["w"].reshape(out_dim, C)).astype(jnp.float32)

    # Fold eval-mode BatchNorm into a per-output-channel affine epilogue.
    inv_std = jax.lax.rsqrt(params["running_var"].astype(jnp.float32) + BN_EPS)
    scale = (params["gamma"] * inv_std).astype(jnp.float32).reshape(1, out_dim)
    shift = (params["beta"] - params["running_mean"] * params["gamma"] * inv_std)
    shift = shift.astype(jnp.float32).reshape(1, out_dim)

    const2d = lambda i: (0, 0)
    out = pl.pallas_call(
        mapping_kernel,
        out_shape=jax.ShapeDtypeStruct((m_pad, out_dim), jnp.float32),
        grid=(m_tiles,),
        in_specs=[
            pl.BlockSpec((tile_m, C), lambda i: (i, 0)),   # activations (tiled over M)
            pl.BlockSpec((C, out_dim), const2d),           # conv weight (resident)
            pl.BlockSpec((1, out_dim), const2d),           # BN scale    (resident)
            pl.BlockSpec((1, out_dim), const2d),           # BN shift    (resident)
        ],
        out_specs=pl.BlockSpec((tile_m, out_dim), lambda i: (i, 0)),
        compiler_params=pltpu.CompilerParams(
            dimension_semantics=("parallel",),
        ),
    )(tokens, w_mat, scale, shift)

    out = out[:M]
    # (B*H*W, out_dim) -> (B, out_dim, H, W)  (back to NCHW like the PyTorch module)
    return jnp.transpose(out.reshape(B, H, W, out_dim), (0, 3, 1, 2))


@functools.partial(jax.jit, static_argnames=("domain",))
def mapping_network_forward(x, params, domain="source"):
    """Mirrors Mapping_Network.forward(x, domain)."""
    if domain == "target":
        return mapping_forward(x, params["target"])
    elif domain == "source":
        return mapping_forward(x, params["source"])
    return x  # matches the PyTorch module: unknown domain -> passthrough


# ---------------------------------------------------------------------------
# Deterministic synthetic parameters + pure-JAX reference for verification
# ---------------------------------------------------------------------------
def init_params(key):
    def make(k, in_dim):
        kw, kg, kb, km, kv = jax.random.split(k, 5)
        return {
            "w": jax.random.normal(kw, (N_DIMENSION, in_dim, 1, 1), jnp.float32)
                 * (float(in_dim) ** -0.5),
            "gamma": 1.0 + 0.1 * jax.random.normal(kg, (N_DIMENSION,), jnp.float32),
            "beta": 0.1 * jax.random.normal(kb, (N_DIMENSION,), jnp.float32),
            "running_mean": 0.1 * jax.random.normal(km, (N_DIMENSION,), jnp.float32),
            "running_var": jax.random.uniform(kv, (N_DIMENSION,), jnp.float32, 0.5, 1.5),
        }
    k_src, k_tar = jax.random.split(key)
    return {"source": make(k_src, SRC_INPUT_DIMENSION),
            "target": make(k_tar, TAR_INPUT_DIMENSION)}


def mapping_reference(x, p):
    w = p["w"].reshape(p["w"].shape[0], p["w"].shape[1])
    y = jnp.einsum("bchw,oc->bohw", x, w, precision=jax.lax.Precision.HIGHEST)
    inv = jax.lax.rsqrt(p["running_var"] + BN_EPS)
    scale = (p["gamma"] * inv)[None, :, None, None]
    shift = (p["beta"] - p["running_mean"] * p["gamma"] * inv)[None, :, None, None]
    return y * scale + shift


if __name__ == "__main__":
    key = jax.random.PRNGKey(0)
    k_param, k_src, k_tar = jax.random.split(key, 3)
    params = init_params(k_param)

    B, H, W = 2, 16, 16
    x_src = jax.random.normal(k_src, (B, SRC_INPUT_DIMENSION, H, W), jnp.float32)
    x_tar = jax.random.normal(k_tar, (B, TAR_INPUT_DIMENSION, H, W), jnp.float32)

    y_src = mapping_network_forward(x_src, params, domain="source")
    y_tar = mapping_network_forward(x_tar, params, domain="target")
    jax.block_until_ready((y_src, y_tar))

    assert y_src.shape == (B, N_DIMENSION, H, W)
    assert y_tar.shape == (B, N_DIMENSION, H, W)
    assert bool(jnp.all(jnp.isfinite(y_src))) and bool(jnp.all(jnp.isfinite(y_tar)))

    ref_src = mapping_reference(x_src, params["source"])
    ref_tar = mapping_reference(x_tar, params["target"])
    err_src = float(jnp.max(jnp.abs(y_src - ref_src)))
    err_tar = float(jnp.max(jnp.abs(y_tar - ref_tar)))
    assert err_src < 1e-2 and err_tar < 1e-2, (err_src, err_tar)

    print("KERNEL_OK")
</pallas_src>

<mosaic_0001>
module attributes {stable_mosaic.version = 11 : i64} {
  func.func @mapping_kernel(%arg0: i32, %arg1: memref<256x256xf32, #tpu.memory_space<vmem>>, %arg2: memref<256x128xf32, #tpu.memory_space<vmem>>, %arg3: memref<1x128xf32, #tpu.memory_space<vmem>>, %arg4: memref<1x128xf32, #tpu.memory_space<vmem>>, %arg5: memref<256x128xf32, #tpu.memory_space<vmem>>) attributes {dimension_semantics = [#tpu.dimension_semantics<parallel>], iteration_bounds = array<i64: 2>, scalar_prefetch = 0 : i64, scratch_operands = 0 : i64, tpu.core_type = #tpu.core_type<tc>, window_params = [{transform_indices = @transform_0, window_bounds = array<i64: 256, 256>}, {pipeline_mode = #tpu.pipeline_mode<synchronous>, transform_indices = @transform_1, window_bounds = array<i64: 256, 128>}, {pipeline_mode = #tpu.pipeline_mode<synchronous>, transform_indices = @transform_2, window_bounds = array<i64: 1, 128>}, {pipeline_mode = #tpu.pipeline_mode<synchronous>, transform_indices = @transform_3, window_bounds = array<i64: 1, 128>}, {transform_indices = @transform_4, window_bounds = array<i64: 256, 128>}]} {
    %c0 = arith.constant 0 : index
    %c0_0 = arith.constant 0 : index
    %0 = vector.load %arg1[%c0, %c0_0] : memref<256x256xf32, #tpu.memory_space<vmem>>, vector<256x256xf32>
    %c0_1 = arith.constant 0 : index
    %c0_2 = arith.constant 0 : index
    %1 = vector.load %arg2[%c0_1, %c0_2] : memref<256x128xf32, #tpu.memory_space<vmem>>, vector<256x128xf32>
    %cst = arith.constant dense<0.000000e+00> : vector<256x128xf32>
    %2 = tpu.matmul %0, %1, %cst {dimension_numbers = #tpu.dot_dimension_numbers<[1], [0], [0], [1], [0, 0, 1, 1], [], []>} : vector<256x256xf32>, vector<256x128xf32>, vector<256x128xf32> -> vector<256x128xf32>
    %c0_3 = arith.constant 0 : index
    %c0_4 = arith.constant 0 : index
    %3 = vector.load %arg3[%c0_3, %c0_4] : memref<1x128xf32, #tpu.memory_space<vmem>>, vector<1x128xf32>
    %4 = vector.broadcast %3 : vector<1x128xf32> to vector<256x128xf32>
    %5 = arith.mulf %2, %4 : vector<256x128xf32>
    %c0_5 = arith.constant 0 : index
    %c0_6 = arith.constant 0 : index
    %6 = vector.load %arg4[%c0_5, %c0_6] : memref<1x128xf32, #tpu.memory_space<vmem>>, vector<1x128xf32>
    %7 = vector.broadcast %6 : vector<1x128xf32> to vector<256x128xf32>
    %8 = arith.addf %5, %7 : vector<256x128xf32>
    %c0_7 = arith.constant 0 : index
    %c0_8 = arith.constant 0 : index
    %9 = vector.load %arg5[%c0_7, %c0_8] : memref<256x128xf32, #tpu.memory_space<vmem>>, vector<256x128xf32>
    tpu.vector_store %arg5[%c0_7, %c0_8], %8 {strides = array<i32>} : memref<256x128xf32, #tpu.memory_space<vmem>>, vector<256x128xf32>,
    return
  }
  func.func @transform_0(%arg0: i32) -> (i32, i32) {
    %c0_i32 = arith.constant 0 : i32
    %c0_i32_0 = arith.constant 0 : i32
    return %arg0, %c0_i32 : i32, i32
  }
  func.func @transform_1(%arg0: i32) -> (i32, i32) {
    %c0_i32 = arith.constant 0 : i32
    %c0_i32_0 = arith.constant 0 : i32
    %c0_i32_1 = arith.constant 0 : i32
    return %c0_i32, %c0_i32_0 : i32, i32
  }
  func.func @transform_2(%arg0: i32) -> (i32, i32) {
    %c0_i32 = arith.constant 0 : i32
    %c0_i32_0 = arith.constant 0 : i32
    %c0_i32_1 = arith.constant 0 : i32
    return %c0_i32, %c0_i32_0 : i32, i32
  }
  func.func @transform_3(%arg0: i32) -> (i32, i32) {
    %c0_i32 = arith.constant 0 : i32
    %c0_i32_0 = arith.constant 0 : i32
    %c0_i32_1 = arith.constant 0 : i32
    return %c0_i32, %c0_i32_0 : i32, i32
  }
  func.func @transform_4(%arg0: i32) -> (i32, i32) {
    %c0_i32 = arith.constant 0 : i32
    %c0_i32_0 = arith.constant 0 : i32
    return %arg0, %c0_i32 : i32, i32
  }
}

</mosaic_0001>

<llo_original>
// kernel: mapping_network_forward.1
$region0: #{mapping_network_forward.1}
  #allocation0 [shape = 'u32[]', space=smem, size = 0x4, offset = 0x4, fixed_abs, tag = 'smem constant byte address 0x4 - core index']
  #allocation1 [shape = 'u32[72,128]{1,0:T(1,128)}', space=vmem, size = 0x9000, scoped, tag = 'internal scratch']
  %s0 = inlined_call_operand.hbm [shape: f32[512,256], index: 0, kind: input, shape index: {}]
  %s1 = inlined_call_operand.vmem [shape: f32[256,128], index: 1, kind: input, shape index: {}]
  %s2 = inlined_call_operand.vmem [shape: f32[1,128], index: 2, kind: input, shape index: {}]
  %s3 = inlined_call_operand.vmem [shape: f32[1,128], index: 3, kind: input, shape index: {}]
  %s4 = inlined_call_operand.hbm [shape: f32[512,128], index: 4, kind: output, shape index: {}]
  %s5 = sld [smem:[#allocation0]]
  $region53: #{mapping_network_forward.1} parent=0
    _
  %s7 = ssub.s32 1, %s5
  %s8 = scalar_select 0, %s7, %s5
  $region1: #{mapping_network_forward.1} parent=0
    #allocation2 [shape = 'u8[524288]{0}', space=vmem, size = 0x80000, scoped, tag = 'input window, operand 0']
    #allocation3 [shape = 's32[2]{0}', space=sflag, size = 0x8, scoped, tag = 'scoped memory for mapping_network_forward.1']
    #allocation4 [shape = 's32[2]{0}', space=sflag, size = 0x8, scoped, tag = 'scoped memory for mapping_network_forward.1']
    #allocation5 [shape = 'u8[262144]{0}', space=vmem, size = 0x40000, scoped, tag = 'output window, operand 0']
    %9 = vsyncpa [#allocation3], 0
    %s10 = scalar_lea.sflag [#allocation3], 1
    %11 = vsyncpa %s10, 0
    %12 = vsyncpa [#allocation4], 0
    %s13 = scalar_lea.sflag [#allocation4], 1
    %14 = vsyncpa %s13, 0
    loop: start=0, step=1, limit=4
    $region2: #{mapping_network_forward.1} parent=1 // loop_pre_header
      _
    $region3: #{mapping_network_forward.1} parent=1 // loop_header
      %s16 = sphi 0, %s20
      %p17 = scmp.ge.s32.totalorder %s16, 4
      %s26 = sphi 0, %s28
      %s29 = sphi 0, %s26
      %s30 = sphi 0, %s29
      %s46 = sphi 0, %s30
      %s50 = sphi 0, %s50
      %s52 = sphi 0, %s50
      %s53 = sphi 0, %s52
      %s67 = sphi 0, %s53
      %s71 = sphi 0, %s71
      %s73 = sphi 0, %s71
      %s74 = sphi 0, %s73
      %s88 = sphi 0, %s74
      %s92 = sphi 0, %s92
      %s94 = sphi 0, %s92
      %s95 = sphi 0, %s94
      %s109 = sphi 0, %s95
      %s115 = sphi 0, %s117
      %s118 = sphi 0, %s115
      %s119 = sphi 0, %s118
      %s135 = sphi 0, %s119
    $region4: #{mapping_network_forward.1} parent=1 // loop_header_branch
      %19 = sbr.rel (%p17) target = $region8
    $region5: #{mapping_network_forward.1} parent=1 // loop_body
      %s21 = ssub.s32 %s16, 1
      %s22 = ssub.s32 %s16, 2
      %s23 = sadd.s32 %s16, 1
      %s24 = ssub.s32 %s16, %s23
      %p25 = scmp.eq.s32.totalorder %s24, 0
      %s27 = sadd.s32 %s26, 1
      %s28 = scalar_select %p25, %s26, %s27
      %p31 = pneg %p25
      %p32 = scmp.eq.s32.totalorder %s16, 1
      %p33 = por %p31, %p32
      %p34 = scmp.ne.s32.totalorder %s26, %s29
      %p35 = scmp.eq.s32.totalorder %s16, 0
      %p36 = por %p34, %p35
      %p37 = scmp.ne.s32.totalorder %s26, %s29
      %p38 = scmp.eq.s32.totalorder %s21, 1
      %p39 = por %p37, %p38
      %p40 = scmp.ne.s32.totalorder %s29, %s30
      %p41 = scmp.eq.s32.totalorder %s21, 0
      %p42 = por %p40, %p41
      %p43 = scmp.ne.s32.totalorder %s29, %s30
      %p44 = scmp.eq.s32.totalorder %s22, 1
      %p45 = por %p43, %p44
      %p47 = scmp.ne.s32.totalorder %s30, %s46
      %p48 = scmp.eq.s32.totalorder %s22, 0
      %p49 = por %p47, %p48
      %s51 = sadd.s32 %s50, 1
      %p54 = scmp.eq.s32.totalorder %s16, 1
      %p55 = scmp.ne.s32.totalorder %s50, %s52
      %p56 = scmp.eq.s32.totalorder %s16, 0
      %p57 = por %p55, %p56
      %p58 = scmp.ne.s32.totalorder %s50, %s52
      %p59 = scmp.eq.s32.totalorder %s21, 1
      %p60 = por %p58, %p59
      %p61 = scmp.ne.s32.totalorder %s52, %s53
      %p62 = scmp.eq.s32.totalorder %s21, 0
      %p63 = por %p61, %p62
      %p64 = scmp.ne.s32.totalorder %s52, %s53
      %p65 = scmp.eq.s32.totalorder %s22, 1
      %p66 = por %p64, %p65
      %p68 = scmp.ne.s32.totalorder %s53, %s67
      %p69 = scmp.eq.s32.totalorder %s22, 0
      %p70 = por %p68, %p69
      %s72 = sadd.s32 %s71, 1
      %p75 = scmp.eq.s32.totalorder %s16, 1
      %p76 = scmp.ne.s32.totalorder %s71, %s73
      %p77 = scmp.eq.s32.totalorder %s16, 0
      %p78 = por %p76, %p77
      %p79 = scmp.ne.s32.totalorder %s71, %s73
      %p80 = scmp.eq.s32.totalorder %s21, 1
      %p81 = por %p79, %p80
      %p82 = scmp.ne.s32.totalorder %s73, %s74
      %p83 = scmp.eq.s32.totalorder %s21, 0
      %p84 = por %p82, %p83
      %p85 = scmp.ne.s32.totalorder %s73, %s74
      %p86 = scmp.eq.s32.totalorder %s22, 1
      %p87 = por %p85, %p86
      %p89 = scmp.ne.s32.totalorder %s74, %s88
      %p90 = scmp.eq.s32.totalorder %s22, 0
      %p91 = por %p89, %p90
      %s93 = sadd.s32 %s92, 1
      %p96 = scmp.eq.s32.totalorder %s16, 1
      %p97 = scmp.ne.s32.totalorder %s92, %s94
      %p98 = scmp.eq.s32.totalorder %s16, 0
      %p99 = por %p97, %p98
      %p100 = scmp.ne.s32.totalorder %s92, %s94
      %p101 = scmp.eq.s32.totalorder %s21, 1
      %p102 = por %p100, %p101
      %p103 = scmp.ne.s32.totalorder %s94, %s95
      %p104 = scmp.eq.s32.totalorder %s21, 0
      %p105 = por %p103, %p104
      %p106 = scmp.ne.s32.totalorder %s94, %s95
      %p107 = scmp.eq.s32.totalorder %s22, 1
      %p108 = por %p106, %p107
      %p110 = scmp.ne.s32.totalorder %s95, %s109
      %p111 = scmp.eq.s32.totalorder %s22, 0
      %p112 = por %p110, %p111
      %s113 = ssub.s32 %s16, %s23
      %p114 = scmp.eq.s32.totalorder %s113, 0
      %s116 = sadd.s32 %s115, 1
      %s117 = scalar_select %p114, %s115, %s116
      %p120 = pneg %p114
      %p121 = scmp.eq.s32.totalorder %s16, 1
      %p122 = por %p120, %p121
      %p123 = scmp.ne.s32.totalorder %s115, %s118
      %p124 = scmp.eq.s32.totalorder %s16, 0
      %p125 = por %p123, %p124
      %p126 = scmp.ne.s32.totalorder %s115, %s118
      %p127 = scmp.eq.s32.totalorder %s21, 1
      %p128 = por %p126, %p127
      %p129 = scmp.ne.s32.totalorder %s118, %s119
      %p130 = scmp.eq.s32.totalorder %s21, 0
      %p131 = por %p129, %p130
      %p132 = scmp.ne.s32.totalorder %s118, %s119
      %p133 = scmp.eq.s32.totalorder %s22, 1
      %p134 = por %p132, %p133
      %p136 = scmp.ne.s32.totalorder %s119, %s135
      %p137 = scmp.eq.s32.totalorder %s22, 0
      %p138 = por %p136, %p137
      %p139 = scmp.le.s32.totalorder 1, %s16
      %p140 = scmp.lt.s32.totalorder %s16, 3
      %p141 = pnand %p139, %p140
      %p142 = pneg %p141
      // Predicated region
      $region9: #{mapping_network_forward.1} parent=5 // pred_check
        _
      $region10: #{mapping_network_forward.1} parent=5 // pred_check_branch
        %144 = sbr.rel (%p141) target = $region12
      $region11: #{mapping_network_forward.1} parent=5 // pred_region
        %s145 = ssub.s32 %s16, 1
        // Predicated region
        $region13: #{mapping_network_forward.1} parent=11 // pred_check
          %p146 = pneg %p63
        $region14: #{mapping_network_forward.1} parent=11 // pred_check_branch
          %148 = sbr.rel (%p146) target = $region16
        $region15: #{mapping_network_forward.1} parent=11 // pred_region
          _
        $region16: #{mapping_network_forward.1} parent=11 // pred_fallthru
          _
        // Predicated region
        $region17: #{mapping_network_forward.1} parent=11 // pred_check
          %p149 = pneg %p84
        $region18: #{mapping_network_forward.1} parent=11 // pred_check_branch
          %151 = sbr.rel (%p149) target = $region20
        $region19: #{mapping_network_forward.1} parent=11 // pred_region
          _
        $region20: #{mapping_network_forward.1} parent=11 // pred_fallthru
          _
        // Predicated region
        $region21: #{mapping_network_forward.1} parent=11 // pred_check
          %p152 = pneg %p105
        $region22: #{mapping_network_forward.1} parent=11 // pred_check_branch
          %154 = sbr.rel (%p152) target = $region24
        $region23: #{mapping_network_forward.1} parent=11 // pred_region
          _
        $region24: #{mapping_network_forward.1} parent=11 // pred_fallthru
          _
      $region12: #{mapping_network_forward.1} parent=5 // pred_fallthru
        _
      %p155 = scmp.lt.s32.totalorder %s16, 2
      // Predicated region
      $region25: #{mapping_network_forward.1} parent=5 // pred_check
        %p156 = pneg %p155
      $region26: #{mapping_network_forward.1} parent=5 // pred_check_branch
        %158 = sbr.rel (%p156) target = $region28
      $region27: #{mapping_network_forward.1} parent=5 // pred_region
        // Predicated region
        $region29: #{mapping_network_forward.1} parent=27 // pred_check
          %p159 = pneg %p36
        $region30: #{mapping_network_forward.1} parent=27 // pred_check_branch
          %161 = sbr.rel (%p159) target = $region32
        $region31: #{mapping_network_forward.1} parent=27 // pred_region
          %s162 = sand.u32 %s26, 1
          %s163 = scalar_lea.sflag [#allocation3], %s162
          %s164 = sand.u32 %s26, 1
          %s165 = smul.addr %s164, 512
          %s166 = scalar_lea.vmem [#allocation2], %s165
          %s167 = smul.u32 32, %s16
          %169 = vsyncadd %s163, 0
          %s170 = smul.addr %s167, 2
          %s171 = smul.addr %s170, 8
          %s172 = scalar_lea.hbm %s0, %s171
          %s173 = sshll.u32 %s172, 4
          %s174 = int_to_ptr.hbm [resolvable:$true] %s173
          %s175 = sshll.u32 %s166, 4
          %s176 = int_to_ptr.vmem [resolvable:$true] %s175
          %181 = dma.hbm_to_vmem [thread:$0]  %s174, 8192, %s176, %s163, 256, 256, 16
        $region32: #{mapping_network_forward.1} parent=27 // pred_fallthru
          _
      $region28: #{mapping_network_forward.1} parent=5 // pred_fallthru
        _
      %p182 = scmp.le.s32.totalorder 1, %s16
      %p183 = scmp.lt.s32.totalorder %s16, 3
      %p184 = pnand %p182, %p183
      %p185 = pneg %p184
      // Predicated region
      $region33: #{mapping_network_forward.1} parent=5 // pred_check
        _
      $region34: #{mapping_network_forward.1} parent=5 // pred_check_branch
        %187 = sbr.rel (%p184) target = $region36
      $region35: #{mapping_network_forward.1} parent=5 // pred_region
        %s188 = ssub.s32 %s16, 1
        %s189 = sand.u32 %s29, 1
        %s190 = scalar_lea.sflag [#allocation3], %s189
        %s191 = sand.u32 %s29, 1
        %s192 = smul.addr %s191, 512
        %s193 = scalar_lea.vmem [#allocation2], %s192
        // Predicated region
        $region37: #{mapping_network_forward.1} parent=35 // pred_check
          %p194 = pneg %p42
        $region38: #{mapping_network_forward.1} parent=35 // pred_check_branch
          %196 = sbr.rel (%p194) target = $region40
        $region39: #{mapping_network_forward.1} parent=35 // pred_region
          %198 = dma.done %s190, 8192
        $region40: #{mapping_network_forward.1} parent=35 // pred_fallthru
          _
        %s199 = sand.u32 %s29, 1
        %s200 = scalar_lea.sflag [#allocation3], %s199
        %s201 = sand.u32 %s29, 1
        %s202 = smul.addr %s201, 512
        %s203 = scalar_lea.vmem [#allocation2], %s202
        %p204 = pneg %p42
        %p205 = pneg %p39
        %p206 = pneg %p63
        %p207 = pneg %p60
        %p208 = pneg %p84
        %p209 = pneg %p81
        %p210 = pneg %p105
        %p211 = pneg %p102
        %p212 = pneg %p131
        %p213 = pneg %p128
        %s214 = sand.u32 %s118, 1
        %s215 = scalar_lea.sflag [#allocation4], %s214
        %s216 = sand.u32 %s118, 1
        %s217 = smul.addr %s216, 256
        %s218 = scalar_lea.vmem [#allocation5], %s217
        %s219 = smul.u32 32, %s21
        %s220 = smul.u32 32, %s21
        %v221 = vld [vmem:[%s193] sm:$0xff]
        %v222 = vld [vmem:[%s193 + $0x8] sm:$0xff]
        %v223 = vld [vmem:[%s193 + $0x10] sm:$0xff]
        %v224 = vld [vmem:[%s193 + $0x18] sm:$0xff]
        %v225 = vld [vmem:[%s193 + $0x20] sm:$0xff]
        %v226 = vld [vmem:[%s193 + $0x28] sm:$0xff]
        %v227 = vld [vmem:[%s193 + $0x30] sm:$0xff]
        %v228 = vld [vmem:[%s193 + $0x38] sm:$0xff]
        %v229 = vld [vmem:[%s193 + $0x40] sm:$0xff]
        %v230 = vld [vmem:[%s193 + $0x48] sm:$0xff]
        %v231 = vld [vmem:[%s193 + $0x50] sm:$0xff]
        %v232 = vld [vmem:[%s193 + $0x58] sm:$0xff]
        %v233 = vld [vmem:[%s193 + $0x60] sm:$0xff]
        %v234 = vld [vmem:[%s193 + $0x68] sm:$0xff]
        %v235 = vld [vmem:[%s193 + $0x70] sm:$0xff]
        %v236 = vld [vmem:[%s193 + $0x78] sm:$0xff]
        %v237 = vld [vmem:[%s193 + $0x80] sm:$0xff]
        %v238 = vld [vmem:[%s193 + $0x88] sm:$0xff]
        %v239 = vld [vmem:[%s193 + $0x90] sm:$0xff]
        %v240 = vld [vmem:[%s193 + $0x98] sm:$0xff]
        %v241 = vld [vmem:[%s193 + $0xa0] sm:$0xff]
        %v242 = vld [vmem:[%s193 + $0xa8] sm:$0xff]
        %v243 = vld [vmem:[%s193 + $0xb0] sm:$0xff]
        %v244 = vld [vmem:[%s193 + $0xb8] sm:$0xff]
        %v245 = vld [vmem:[%s193 + $0xc0] sm:$0xff]
        %v246 = vld [vmem:[%s193 + $0xc8] sm:$0xff]
        %v247 = vld [vmem:[%s193 + $0xd0] sm:$0xff]
        %v248 = vld [vmem:[%s193 + $0xd8] sm:$0xff]
        %v249 = vld [vmem:[%s193 + $0xe0] sm:$0xff]
        %v250 = vld [vmem:[%s193 + $0xe8] sm:$0xff]
        %v251 = vld [vmem:[%s193 + $0xf0] sm:$0xff]
        %v252 = vld [vmem:[%s193 + $0xf8] sm:$0xff]
        %v253 = vld [vmem:[%s193 + $0x100] sm:$0xff]
        %v254 = vld [vmem:[%s193 + $0x108] sm:$0xff]
        %v255 = vld [vmem:[%s193 + $0x110] sm:$0xff]
        %v256 = vld [vmem:[%s193 + $0x118] sm:$0xff]
        %v257 = vld [vmem:[%s193 + $0x120] sm:$0xff]
        %v258 = vld [vmem:[%s193 + $0x128] sm:$0xff]
        %v259 = vld [vmem:[%s193 + $0x130] sm:$0xff]
        %v260 = vld [vmem:[%s193 + $0x138] sm:$0xff]
        %v261 = vld [vmem:[%s193 + $0x140] sm:$0xff]
        %v262 = vld [vmem:[%s193 + $0x148] sm:$0xff]
        %v263 = vld [vmem:[%s193 + $0x150] sm:$0xff]
        %v264 = vld [vmem:[%s193 + $0x158] sm:$0xff]
        %v265 = vld [vmem:[%s193 + $0x160] sm:$0xff]
        %v266 = vld [vmem:[%s193 + $0x168] sm:$0xff]
        %v267 = vld [vmem:[%s193 + $0x170] sm:$0xff]
        %v268 = vld [vmem:[%s193 + $0x178] sm:$0xff]
        %v269 = vld [vmem:[%s193 + $0x180] sm:$0xff]
        %v270 = vld [vmem:[%s193 + $0x188] sm:$0xff]
        %v271 = vld [vmem:[%s193 + $0x190] sm:$0xff]
        %v272 = vld [vmem:[%s193 + $0x198] sm:$0xff]
        %v273 = vld [vmem:[%s193 + $0x1a0] sm:$0xff]
        %v274 = vld [vmem:[%s193 + $0x1a8] sm:$0xff]
        %v275 = vld [vmem:[%s193 + $0x1b0] sm:$0xff]
        %v276 = vld [vmem:[%s193 + $0x1b8] sm:$0xff]
        %v277 = vld [vmem:[%s193 + $0x1c0] sm:$0xff]
        %v278 = vld [vmem:[%s193 + $0x1c8] sm:$0xff]
        %v279 = vld [vmem:[%s193 + $0x1d0] sm:$0xff]
        %v280 = vld [vmem:[%s193 + $0x1d8] sm:$0xff]
        %v281 = vld [vmem:[%s193 + $0x1e0] sm:$0xff]
        %v282 = vld [vmem:[%s193 + $0x1e8] sm:$0xff]
        %v283 = vld [vmem:[%s193 + $0x1f0] sm:$0xff]
        %v284 = vld [vmem:[%s193 + $0x1f8] sm:$0xff]
        %v285 = vld [vmem:[%s1] sm:$0xff]
        %v286 = vld [vmem:[%s1 + $0x8] sm:$0xff]
        %v287 = vld [vmem:[%s1 + $0x10] sm:$0xff]
        %v288 = vld [vmem:[%s1 + $0x18] sm:$0xff]
        %v289 = vld [vmem:[%s1 + $0x20] sm:$0xff]
        %v290 = vld [vmem:[%s1 + $0x28] sm:$0xff]
        %v291 = vld [vmem:[%s1 + $0x30] sm:$0xff]
        %v292 = vld [vmem:[%s1 + $0x38] sm:$0xff]
        %v293 = vld [vmem:[%s1 + $0x40] sm:$0xff]
        %v294 = vld [vmem:[%s1 + $0x48] sm:$0xff]
        %v295 = vld [vmem:[%s1 + $0x50] sm:$0xff]
        %v296 = vld [vmem:[%s1 + $0x58] sm:$0xff]
        %v297 = vld [vmem:[%s1 + $0x60] sm:$0xff]
        %v298 = vld [vmem:[%s1 + $0x68] sm:$0xff]
        %v299 = vld [vmem:[%s1 + $0x70] sm:$0xff]
        %v300 = vld [vmem:[%s1 + $0x78] sm:$0xff]
        %v301 = vld [vmem:[%s1 + $0x80] sm:$0xff]
        %v302 = vld [vmem:[%s1 + $0x88] sm:$0xff]
        %v303 = vld [vmem:[%s1 + $0x90] sm:$0xff]
        %v304 = vld [vmem:[%s1 + $0x98] sm:$0xff]
        %v305 = vld [vmem:[%s1 + $0xa0] sm:$0xff]
        %v306 = vld [vmem:[%s1 + $0xa8] sm:$0xff]
        %v307 = vld [vmem:[%s1 + $0xb0] sm:$0xff]
        %v308 = vld [vmem:[%s1 + $0xb8] sm:$0xff]
        %v309 = vld [vmem:[%s1 + $0xc0] sm:$0xff]
        %v310 = vld [vmem:[%s1 + $0xc8] sm:$0xff]
        %v311 = vld [vmem:[%s1 + $0xd0] sm:$0xff]
        %v312 = vld [vmem:[%s1 + $0xd8] sm:$0xff]
        %v313 = vld [vmem:[%s1 + $0xe0] sm:$0xff]
        %v314 = vld [vmem:[%s1 + $0xe8] sm:$0xff]
        %v315 = vld [vmem:[%s1 + $0xf0] sm:$0xff]
        %v316 = vld [vmem:[%s1 + $0xf8] sm:$0xff]
        %317 = vmatpush.msra.mxu0 %v300
        %318 = vmatpush.msra.mxu0 %v299
        %319 = vmatpush.msra.mxu0 %v298
        %320 = vmatpush.msra.mxu0 %v297
        %321 = vmatpush.msra.mxu0 %v296
        %322 = vmatpush.msra.mxu0 %v295
        %323 = vmatpush.msra.mxu0 %v294
        %324 = vmatpush.msra.mxu0 %v293
        %325 = vmatpush.msra.mxu0 %v292
        %326 = vmatpush.msra.mxu0 %v291
        %327 = vmatpush.msra.mxu0 %v290
        %328 = vmatpush.msra.mxu0 %v289
        %329 = vmatpush.msra.mxu0 %v288
        %330 = vmatpush.msra.mxu0 %v287
        %331 = vmatpush.msra.mxu0 %v286
        %332 = vmatpush.msra.mxu0 %v285
        %333 = vmatmul.f32.gmra.mxu0 %v221
        %v334 = vpop.f32.mrf.mxu0
        %v335 = vadd.f32 0.0, %v334
        %336 = vmatmul.f32.gmra.mxu0 %v223
        %v337 = vpop.f32.mrf.mxu0
        %v338 = vadd.f32 0.0, %v337
        %339 = vmatmul.f32.gmra.mxu0 %v225
        %v340 = vpop.f32.mrf.mxu0
        %v341 = vadd.f32 0.0, %v340
        %342 = vmatmul.f32.gmra.mxu0 %v227
        %v343 = vpop.f32.mrf.mxu0
        %v344 = vadd.f32 0.0, %v343
        %345 = vmatmul.f32.gmra.mxu0 %v229
        %v346 = vpop.f32.mrf.mxu0
        %v347 = vadd.f32 0.0, %v346
        %348 = vmatmul.f32.gmra.mxu0 %v231
        %v349 = vpop.f32.mrf.mxu0
        %v350 = vadd.f32 0.0, %v349
        %351 = vmatmul.f32.gmra.mxu0 %v233
        %v352 = vpop.f32.mrf.mxu0
        %v353 = vadd.f32 0.0, %v352
        %354 = vmatmul.f32.gmra.mxu0 %v235
        %v355 = vpop.f32.mrf.mxu0
        %v356 = vadd.f32 0.0, %v355
        %357 = vmatmul.f32.gmra.mxu0 %v237
        %v358 = vpop.f32.mrf.mxu0
        %v359 = vadd.f32 0.0, %v358
        %360 = vmatmul.f32.gmra.mxu0 %v239
        %v361 = vpop.f32.mrf.mxu0
        %v362 = vadd.f32 0.0, %v361
        %363 = vmatmul.f32.gmra.mxu0 %v241
        %v364 = vpop.f32.mrf.mxu0
        %v365 = vadd.f32 0.0, %v364
        %366 = vmatmul.f32.gmra.mxu0 %v243
        %v367 = vpop.f32.mrf.mxu0
        %v368 = vadd.f32 0.0, %v367
        %369 = vmatmul.f32.gmra.mxu0 %v245
        %v370 = vpop.f32.mrf.mxu0
        %v371 = vadd.f32 0.0, %v370
        %372 = vmatmul.f32.gmra.mxu0 %v247
        %v373 = vpop.f32.mrf.mxu0
        %v374 = vadd.f32 0.0, %v373
        %375 = vmatmul.f32.gmra.mxu0 %v249
        %v376 = vpop.f32.mrf.mxu0
        %v377 = vadd.f32 0.0, %v376
        %378 = vmatmul.f32.gmra.mxu0 %v251
        %v379 = vpop.f32.mrf.mxu0
        %v380 = vadd.f32 0.0, %v379
        %381 = vmatmul.f32.gmra.mxu0 %v253
        %v382 = vpop.f32.mrf.mxu0
        %v383 = vadd.f32 0.0, %v382
        %384 = vmatmul.f32.gmra.mxu0 %v255
        %v385 = vpop.f32.mrf.mxu0
        %v386 = vadd.f32 0.0, %v385
        %387 = vmatmul.f32.gmra.mxu0 %v257
        %v388 = vpop.f32.mrf.mxu0
        %v389 = vadd.f32 0.0, %v388
        %390 = vmatmul.f32.gmra.mxu0 %v259
        %v391 = vpop.f32.mrf.mxu0
        %v392 = vadd.f32 0.0, %v391
        %393 = vmatmul.f32.gmra.mxu0 %v261
        %v394 = vpop.f32.mrf.mxu0
        %v395 = vadd.f32 0.0, %v394
        %396 = vmatmul.f32.gmra.mxu0 %v263
        %v397 = vpop.f32.mrf.mxu0
        %v398 = vadd.f32 0.0, %v397
        %399 = vmatmul.f32.gmra.mxu0 %v265
        %v400 = vpop.f32.mrf.mxu0
        %v401 = vadd.f32 0.0, %v400
        %402 = vmatmul.f32.gmra.mxu0 %v267
        %v403 = vpop.f32.mrf.mxu0
        %v404 = vadd.f32 0.0, %v403
        %405 = vmatmul.f32.gmra.mxu0 %v269
        %v406 = vpop.f32.mrf.mxu0
        %v407 = vadd.f32 0.0, %v406
        %408 = vmatmul.f32.gmra.mxu0 %v271
        %v409 = vpop.f32.mrf.mxu0
        %v410 = vadd.f32 0.0, %v409
        %411 = vmatmul.f32.gmra.mxu0 %v273
        %v412 = vpop.f32.mrf.mxu0
        %v413 = vadd.f32 0.0, %v412
        %414 = vmatmul.f32.gmra.mxu0 %v275
        %v415 = vpop.f32.mrf.mxu0
        %v416 = vadd.f32 0.0, %v415
        %417 = vmatmul.f32.gmra.mxu0 %v277
        %v418 = vpop.f32.mrf.mxu0
        %v419 = vadd.f32 0.0, %v418
        %420 = vmatmul.f32.gmra.mxu0 %v279
        %v421 = vpop.f32.mrf.mxu0
        %v422 = vadd.f32 0.0, %v421
        %423 = vmatmul.f32.gmra.mxu0 %v281
        %v424 = vpop.f32.mrf.mxu0
        %v425 = vadd.f32 0.0, %v424
        %426 = vmatmul.f32.gmra.mxu0 %v283
        %v427 = vpop.f32.mrf.mxu0
        %v428 = vadd.f32 0.0, %v427
        %429 = vdwg.mxu0
        %430 = vmatpush.msra.mxu0 %v316
        %431 = vmatpush.msra.mxu0 %v315
        %432 = vmatpush.msra.mxu0 %v314
        %433 = vmatpush.msra.mxu0 %v313
        %434 = vmatpush.msra.mxu0 %v312
        %435 = vmatpush.msra.mxu0 %v311
        %436 = vmatpush.msra.mxu0 %v310
        %437 = vmatpush.msra.mxu0 %v309
        %438 = vmatpush.msra.mxu0 %v308
        %439 = vmatpush.msra.mxu0 %v307
        %440 = vmatpush.msra.mxu0 %v306
        %441 = vmatpush.msra.mxu0 %v305
        %442 = vmatpush.msra.mxu0 %v304
        %443 = vmatpush.msra.mxu0 %v303
        %444 = vmatpush.msra.mxu0 %v302
        %445 = vmatpush.msra.mxu0 %v301
        %446 = vmatmul.f32.gmra.mxu0 %v222
        %v447 = vpop.f32.mrf.mxu0
        %v448 = vadd.f32 %v335, %v447
        %449 = vmatmul.f32.gmra.mxu0 %v224
        %v450 = vpop.f32.mrf.mxu0
        %v451 = vadd.f32 %v338, %v450
        %452 = vmatmul.f32.gmra.mxu0 %v226
        %v453 = vpop.f32.mrf.mxu0
        %v454 = vadd.f32 %v341, %v453
        %455 = vmatmul.f32.gmra.mxu0 %v228
        %v456 = vpop.f32.mrf.mxu0
        %v457 = vadd.f32 %v344, %v456
        %458 = vmatmul.f32.gmra.mxu0 %v230
        %v459 = vpop.f32.mrf.mxu0
        %v460 = vadd.f32 %v347, %v459
        %461 = vmatmul.f32.gmra.mxu0 %v232
        %v462 = vpop.f32.mrf.mxu0
        %v463 = vadd.f32 %v350, %v462
        %464 = vmatmul.f32.gmra.mxu0 %v234
        %v465 = vpop.f32.mrf.mxu0
        %v466 = vadd.f32 %v353, %v465
        %467 = vmatmul.f32.gmra.mxu0 %v236
        %v468 = vpop.f32.mrf.mxu0
        %v469 = vadd.f32 %v356, %v468
        %470 = vmatmul.f32.gmra.mxu0 %v238
        %v471 = vpop.f32.mrf.mxu0
        %v472 = vadd.f32 %v359, %v471
        %473 = vmatmul.f32.gmra.mxu0 %v240
        %v474 = vpop.f32.mrf.mxu0
        %v475 = vadd.f32 %v362, %v474
        %476 = vmatmul.f32.gmra.mxu0 %v242
        %v477 = vpop.f32.mrf.mxu0
        %v478 = vadd.f32 %v365, %v477
        %479 = vmatmul.f32.gmra.mxu0 %v244
        %v480 = vpop.f32.mrf.mxu0
        %v481 = vadd.f32 %v368, %v480
        %482 = vmatmul.f32.gmra.mxu0 %v246
        %v483 = vpop.f32.mrf.mxu0
        %v484 = vadd.f32 %v371, %v483
        %485 = vmatmul.f32.gmra.mxu0 %v248
        %v486 = vpop.f32.mrf.mxu0
        %v487 = vadd.f32 %v374, %v486
        %488 = vmatmul.f32.gmra.mxu0 %v250
        %v489 = vpop.f32.mrf.mxu0
        %v490 = vadd.f32 %v377, %v489
        %491 = vmatmul.f32.gmra.mxu0 %v252
        %v492 = vpop.f32.mrf.mxu0
        %v493 = vadd.f32 %v380, %v492
        %494 = vmatmul.f32.gmra.mxu0 %v254
        %v495 = vpop.f32.mrf.mxu0
        %v496 = vadd.f32 %v383, %v495
        %497 = vmatmul.f32.gmra.mxu0 %v256
        %v498 = vpop.f32.mrf.mxu0
        %v499 = vadd.f32 %v386, %v498
        %500 = vmatmul.f32.gmra.mxu0 %v258
        %v501 = vpop.f32.mrf.mxu0
        %v502 = vadd.f32 %v389, %v501
        %503 = vmatmul.f32.gmra.mxu0 %v260
        %v504 = vpop.f32.mrf.mxu0
        %v505 = vadd.f32 %v392, %v504
        %506 = vmatmul.f32.gmra.mxu0 %v262
        %v507 = vpop.f32.mrf.mxu0
        %v508 = vadd.f32 %v395, %v507
        %509 = vmatmul.f32.gmra.mxu0 %v264
        %v510 = vpop.f32.mrf.mxu0
        %v511 = vadd.f32 %v398, %v510
        %512 = vmatmul.f32.gmra.mxu0 %v266
        %v513 = vpop.f32.mrf.mxu0
        %v514 = vadd.f32 %v401, %v513
        %515 = vmatmul.f32.gmra.mxu0 %v268
        %v516 = vpop.f32.mrf.mxu0
        %v517 = vadd.f32 %v404, %v516
        %518 = vmatmul.f32.gmra.mxu0 %v270
        %v519 = vpop.f32.mrf.mxu0
        %v520 = vadd.f32 %v407, %v519
        %521 = vmatmul.f32.gmra.mxu0 %v272
        %v522 = vpop.f32.mrf.mxu0
        %v523 = vadd.f32 %v410, %v522
        %524 = vmatmul.f32.gmra.mxu0 %v274
        %v525 = vpop.f32.mrf.mxu0
        %v526 = vadd.f32 %v413, %v525
        %527 = vmatmul.f32.gmra.mxu0 %v276
        %v528 = vpop.f32.mrf.mxu0
        %v529 = vadd.f32 %v416, %v528
        %530 = vmatmul.f32.gmra.mxu0 %v278
        %v531 = vpop.f32.mrf.mxu0
        %v532 = vadd.f32 %v419, %v531
        %533 = vmatmul.f32.gmra.mxu0 %v280
        %v534 = vpop.f32.mrf.mxu0
        %v535 = vadd.f32 %v422, %v534
        %536 = vmatmul.f32.gmra.mxu0 %v282
        %v537 = vpop.f32.mrf.mxu0
        %v538 = vadd.f32 %v425, %v537
        %539 = vmatmul.f32.gmra.mxu0 %v284
        %v540 = vpop.f32.mrf.mxu0
        %v541 = vadd.f32 %v428, %v540
        %542 = vdwg.mxu0
        %v543 = vld [vmem:[%s2] sm:$0x1]
        %v545 = vperm.slane %v543, 0
        %v547 = vmul.f32 %v448, %v545
        %v548 = vmul.f32 %v451, %v545
        %v549 = vmul.f32 %v454, %v545
        %v550 = vmul.f32 %v457, %v545
        %v551 = vmul.f32 %v460, %v545
        %v552 = vmul.f32 %v463, %v545
        %v553 = vmul.f32 %v466, %v545
        %v554 = vmul.f32 %v469, %v545
        %v555 = vmul.f32 %v472, %v545
        %v556 = vmul.f32 %v475, %v545
        %v557 = vmul.f32 %v478, %v545
        %v558 = vmul.f32 %v481, %v545
        %v559 = vmul.f32 %v484, %v545
        %v560 = vmul.f32 %v487, %v545
        %v561 = vmul.f32 %v490, %v545
        %v562 = vmul.f32 %v493, %v545
        %v563 = vmul.f32 %v496, %v545
        %v564 = vmul.f32 %v499, %v545
        %v565 = vmul.f32 %v502, %v545
        %v566 = vmul.f32 %v505, %v545
        %v567 = vmul.f32 %v508, %v545
        %v568 = vmul.f32 %v511, %v545
        %v569 = vmul.f32 %v514, %v545
        %v570 = vmul.f32 %v517, %v545
        %v571 = vmul.f32 %v520, %v545
        %v572 = vmul.f32 %v523, %v545
        %v573 = vmul.f32 %v526, %v545
        %v574 = vmul.f32 %v529, %v545
        %v575 = vmul.f32 %v532, %v545
        %v576 = vmul.f32 %v535, %v545
        %v577 = vmul.f32 %v538, %v545
        %v578 = vmul.f32 %v541, %v545
        %v579 = vld [vmem:[%s3] sm:$0x1]
        %v581 = vperm.slane %v579, 0
        %v583 = vadd.f32 %v547, %v581
        %v584 = vadd.f32 %v548, %v581
        %v585 = vadd.f32 %v549, %v581
        %v586 = vadd.f32 %v550, %v581
        %v587 = vadd.f32 %v551, %v581
        %v588 = vadd.f32 %v552, %v581
        %v589 = vadd.f32 %v553, %v581
        %v590 = vadd.f32 %v554, %v581
        %v591 = vadd.f32 %v555, %v581
        %v592 = vadd.f32 %v556, %v581
        %v593 = vadd.f32 %v557, %v581
        %v594 = vadd.f32 %v558, %v581
        %v595 = vadd.f32 %v559, %v581
        %v596 = vadd.f32 %v560, %v581
        %v597 = vadd.f32 %v561, %v581
        %v598 = vadd.f32 %v562, %v581
        %v599 = vadd.f32 %v563, %v581
        %v600 = vadd.f32 %v564, %v581
        %v601 = vadd.f32 %v565, %v581
        %v602 = vadd.f32 %v566, %v581
        %v603 = vadd.f32 %v567, %v581
        %v604 = vadd.f32 %v568, %v581
        %v605 = vadd.f32 %v569, %v581
        %v606 = vadd.f32 %v570, %v581
        %v607 = vadd.f32 %v571, %v581
        %v608 = vadd.f32 %v572, %v581
        %v609 = vadd.f32 %v573, %v581
        %v610 = vadd.f32 %v574, %v581
        %v611 = vadd.f32 %v575, %v581
        %v612 = vadd.f32 %v576, %v581
        %v613 = vadd.f32 %v577, %v581
        %v614 = vadd.f32 %v578, %v581
        %615 = vst [vmem:[%s218] sm:$0xff] %v583
        %616 = vst [vmem:[%s218 + $0x8] sm:$0xff] %v584
        %617 = vst [vmem:[%s218 + $0x10] sm:$0xff] %v585
        %618 = vst [vmem:[%s218 + $0x18] sm:$0xff] %v586
        %619 = vst [vmem:[%s218 + $0x20] sm:$0xff] %v587
        %620 = vst [vmem:[%s218 + $0x28] sm:$0xff] %v588
        %621 = vst [vmem:[%s218 + $0x30] sm:$0xff] %v589
        %622 = vst [vmem:[%s218 + $0x38] sm:$0xff] %v590
        %623 = vst [vmem:[%s218 + $0x40] sm:$0xff] %v591
        %624 = vst [vmem:[%s218 + $0x48] sm:$0xff] %v592
        %625 = vst [vmem:[%s218 + $0x50] sm:$0xff] %v593
        %626 = vst [vmem:[%s218 + $0x58] sm:$0xff] %v594
        %627 = vst [vmem:[%s218 + $0x60] sm:$0xff] %v595
        %628 = vst [vmem:[%s218 + $0x68] sm:$0xff] %v596
        %629 = vst [vmem:[%s218 + $0x70] sm:$0xff] %v597
        %630 = vst [vmem:[%s218 + $0x78] sm:$0xff] %v598
        %631 = vst [vmem:[%s218 + $0x80] sm:$0xff] %v599
        %632 = vst [vmem:[%s218 + $0x88] sm:$0xff] %v600
        %633 = vst [vmem:[%s218 + $0x90] sm:$0xff] %v601
        %634 = vst [vmem:[%s218 + $0x98] sm:$0xff] %v602
        %635 = vst [vmem:[%s218 + $0xa0] sm:$0xff] %v603
        %636 = vst [vmem:[%s218 + $0xa8] sm:$0xff] %v604
        %637 = vst [vmem:[%s218 + $0xb0] sm:$0xff] %v605
        %638 = vst [vmem:[%s218 + $0xb8] sm:$0xff] %v606
        %639 = vst [vmem:[%s218 + $0xc0] sm:$0xff] %v607
        %640 = vst [vmem:[%s218 + $0xc8] sm:$0xff] %v608
        %641 = vst [vmem:[%s218 + $0xd0] sm:$0xff] %v609
        %642 = vst [vmem:[%s218 + $0xd8] sm:$0xff] %v610
        %643 = vst [vmem:[%s218 + $0xe0] sm:$0xff] %v611
        %644 = vst [vmem:[%s218 + $0xe8] sm:$0xff] %v612
        %645 = vst [vmem:[%s218 + $0xf0] sm:$0xff] %v613
        %646 = vst [vmem:[%s218 + $0xf8] sm:$0xff] %v614
        %s647 = sand.u32 %s118, 1
        %s648 = scalar_lea.sflag [#allocation4], %s647
        %s649 = sand.u32 %s118, 1
        %s650 = smul.addr %s649, 256
        %s651 = scalar_lea.vmem [#allocation5], %s650
        // Predicated region
        $region41: #{mapping_network_forward.1} parent=35 // pred_check
          %p652 = pneg %p128
        $region42: #{mapping_network_forward.1} parent=35 // pred_check_branch
          %654 = sbr.rel (%p652) target = $region44
        $region43: #{mapping_network_forward.1} parent=35 // pred_region
          %s655 = smul.u32 32, %s21
          %657 = vsyncadd %s648, 0
          %s658 = smul.addr %s655, 8
          %s659 = scalar_lea.hbm %s4, %s658
          %s660 = sshll.u32 %s651, 4
          %s661 = int_to_ptr.vmem [resolvable:$true] %s660
          %s662 = sshll.u32 %s659, 4
          %s663 = int_to_ptr.hbm [resolvable:$true] %s662
          %668 = dma.vmem_to_hbm [thread:$0]  %s661, 4096, %s663, %s648, 128, 128, 8
        $region44: #{mapping_network_forward.1} parent=35 // pred_fallthru
          _
      $region36: #{mapping_network_forward.1} parent=5 // pred_fallthru
        _
      %p669 = scmp.le.s32.totalorder 2, %s16
      // Predicated region
      $region45: #{mapping_network_forward.1} parent=5 // pred_check
        %p670 = pneg %p669
      $region46: #{mapping_network_forward.1} parent=5 // pred_check_branch
        %672 = sbr.rel (%p670) target = $region48
      $region47: #{mapping_network_forward.1} parent=5 // pred_region
        %s673 = ssub.s32 %s16, 2
        // Predicated region
        $region49: #{mapping_network_forward.1} parent=47 // pred_check
          %p674 = pneg %p134
        $region50: #{mapping_network_forward.1} parent=47 // pred_check_branch
          %676 = sbr.rel (%p674) target = $region52
        $region51: #{mapping_network_forward.1} parent=47 // pred_region
          %s677 = sand.u32 %s119, 1
          %s678 = scalar_lea.sflag [#allocation4], %s677
          %s679 = sand.u32 %s119, 1
          %s680 = smul.addr %s679, 256
          %s681 = scalar_lea.vmem [#allocation5], %s680
          %683 = dma.done %s678, 4096
        $region52: #{mapping_network_forward.1} parent=47 // pred_fallthru
          _
      $region48: #{mapping_network_forward.1} parent=5 // pred_fallthru
        _
    $region6: #{mapping_network_forward.1} parent=1 // loop_footer
      %s20 = sadd.s32 1, %s16
    $region7: #{mapping_network_forward.1} parent=1 // loop_footer_branch
      %15 = sbr.rel target = $region3
    $region8: #{mapping_network_forward.1} parent=1 // loop_exit
      _
    %684 = vsyncpa [#allocation3], 1
    %s685 = scalar_lea.sflag [#allocation3], 1
    %686 = vsyncpa %s685, 1
    %687 = vsyncpa [#allocation4], 1
    %s688 = scalar_lea.sflag [#allocation4], 1
    %689 = vsyncpa %s688, 1

</llo_original>
